<compile_context>
chip_gen: v7x
topology: tpu7x:2x2x1
jax: 0.10.0
libtpu: 0.0.40
codegen_flags: <defaults>
</compile_context>

<pallas_src>
import math

import jax
import jax.numpy as jnp
from jax import lax
from jax.experimental import pallas as pl
from jax.experimental.pallas import tpu as pltpu

_VMEM = pl.BlockSpec(memory_space=pltpu.MemorySpace.VMEM)

# pltpu.roll is expected to follow np.roll semantics (out[i] = in[i - shift]).
# detect_roll_convention() verifies this on the real device once, outside jit,
# so the conv tap shifts are correct regardless of the rotate direction.
_ROLL_NUMPY = True


def detect_roll_convention():
    global _ROLL_NUMPY

    def probe(x_ref, o_ref):
        o_ref[...] = pltpu.roll(x_ref[...], 1, axis=0)

    x = jnp.arange(8 * 128, dtype=jnp.float32).reshape(8, 128)
    y = pl.pallas_call(
        probe,
        out_shape=jax.ShapeDtypeStruct((8, 128), jnp.float32),
        in_specs=[_VMEM],
        out_specs=_VMEM,
    )(x)
    _ROLL_NUMPY = bool(jnp.array_equal(y, jnp.roll(x, 1, axis=0)))


# ----------------------------- in-kernel helpers -----------------------------

def _shift_rows(x, off, m):
    """xs[r] = x[(r + off) % m]; rows that wrap are masked away by the caller."""
    if off % m == 0:
        return x
    if m % 8 == 0:  # sublane-aligned: cheap XLU rotate
        shift = (-off) % m if _ROLL_NUMPY else off % m
        return pltpu.roll(x, shift, axis=0)
    # tiny geometry (< 8 rows, e.g. 2x2 spatial): one-hot shift operator on MXU
    r = lax.broadcasted_iota(jnp.int32, (m, m), 0)
    k = lax.broadcasted_iota(jnp.int32, (m, m), 1)
    g = (k == ((r + off) % m)).astype(x.dtype)
    return jnp.dot(g, x, preferred_element_type=jnp.float32).astype(x.dtype)


def _conv3x3(x, w_ref, b_ref, h, w, relu_in):
    """3x3 / stride 1 / pad 1 conv on a flat (h*w, Cin) f32 activation.

    9 shifted+masked matmuls (bf16 inputs, f32 accumulate), bias added in f32.
    w_ref: (9, Cin, Cout) bf16 taps (tap t = kh*3+kw); b_ref: (1, Cout) f32.
    """
    m = x.shape[0]
    if relu_in:
        x = jnp.maximum(x, 0.0)
    row = lax.broadcasted_iota(jnp.int32, (m, 1), 0)
    ii = row // w
    jj = row - ii * w
    acc = None
    t = 0
    for dh in (-1, 0, 1):
        for dw in (-1, 0, 1):
            xs = _shift_rows(x, dh * w + dw, m)
            valid = ((ii >= -dh) & (ii < h - dh) &
                     (jj >= -dw) & (jj < w - dw))
            xs = jnp.where(valid, xs, 0.0).astype(jnp.bfloat16)
            part = jnp.dot(xs, w_ref[t], preferred_element_type=jnp.float32)
            acc = part if acc is None else acc + part
            t += 1
    return acc + b_ref[...]


def _maxpool3x3_s2p1(y, h, w):
    """nn.MaxPool2d(kernel=3, stride=2, padding=1) on a flat (h*w, C) map."""
    m = y.shape[0]
    ho, wo = (h + 1) // 2, (w + 1) // 2
    mo = ho * wo
    row = lax.broadcasted_iota(jnp.int32, (m, 1), 0)
    ii = row // w
    jj = row - ii * w
    best = y                                    # centre tap is always valid
    for dh in (-1, 0, 1):
        for dw in (-1, 0, 1):
            if dh == 0 and dw == 0:
                continue
            ys = _shift_rows(y, dh * w + dw, m)
            valid = ((ii >= -dh) & (ii < h - dh) &
                     (jj >= -dw) & (jj < w - dw))
            best = jnp.where(valid, jnp.maximum(best, ys), best)
    # stride-2 down-sample: one-hot selection of rows 2*oi*w + 2*oj (MXU).
    o = lax.broadcasted_iota(jnp.int32, (mo, m), 0)
    k = lax.broadcasted_iota(jnp.int32, (mo, m), 1)
    oi = o // wo
    oj = o - oi * wo
    sel = (k == (2 * oi * w + 2 * oj)).astype(jnp.float32)
    return jnp.dot(sel, best, preferred_element_type=jnp.float32)


def _make_forward_kernel(stage_hw, num_actions):
    """Entire ImpalaCNN forward for one batch element (one grid step)."""

    def kernel(*refs):
        ins = refs[:-3]
        logits_ref, logp_ref, value_ref = refs[-3:]

        x = ins[0][0]                           # (H*W, Cin) f32 for this sample
        idx = 1
        for (h, w) in stage_hw:                 # ConvSequence
            wc, bc = ins[idx], ins[idx + 1]
            rb = ins[idx + 2: idx + 10]
            idx += 10
            x = _conv3x3(x, wc, bc, h, w, relu_in=False)
            x = _maxpool3x3_s2p1(x, h, w)
            ho, wo = (h + 1) // 2, (w + 1) // 2
            for r in range(2):                  # ResidualBlock
                w0, b0, w1, b1 = rb[4 * r: 4 * r + 4]
                mid = _conv3x3(x, w0, b0, ho, wo, relu_in=True)
                x = _conv3x3(mid, w1, b1, ho, wo, relu_in=True) + x

        wh_ref, bh_ref, whd_ref, bhd_ref = ins[idx: idx + 4]
        p_sp = x.shape[0]
        xr = jnp.maximum(x, 0.0)                # relu before hidden_fc
        hid = bh_ref[...]                       # (1, 256) f32
        for p in range(p_sp):                   # flatten-free LazyLinear
            hid = hid + jnp.dot(xr[p:p + 1, :].astype(jnp.bfloat16), wh_ref[p],
                                preferred_element_type=jnp.float32)
        hid = jnp.maximum(hid, 0.0)

        # merged logits + value head, log_softmax fused in the epilogue
        head = jnp.dot(hid.astype(jnp.bfloat16), whd_ref[...],
                       preferred_element_type=jnp.float32) + bhd_ref[...]
        logits = head[:, :num_actions]
        value = head[:, num_actions:num_actions + 1]
        mx = jnp.max(logits, axis=-1, keepdims=True)
        lse = jnp.log(jnp.sum(jnp.exp(logits - mx), axis=-1, keepdims=True)) + mx
        logits_ref[0] = logits
        logp_ref[0] = logits - lse
        value_ref[0] = value

    return kernel


# --------------------------------- wrapper -----------------------------------

def _prep_conv(w_oihw, b):
    """(Cout, Cin, 3, 3) torch weight -> (9, Cin, Cout) bf16 taps, (1,Cout) f32 bias."""
    cout, cin = w_oihw.shape[0], w_oihw.shape[1]
    w = jnp.transpose(w_oihw, (2, 3, 1, 0)).reshape(9, cin, cout)
    return w.astype(jnp.bfloat16), b.reshape(1, cout).astype(jnp.float32)


def impala_cnn_forward(obs_image, memory, params):
    """obs_image: (B, H, W, C) float32 (like obs.image in torch, NHWC)."""
    x = obs_image.astype(jnp.float32)
    b_sz, h, w, c = x.shape
    num_actions = params['logits_w'].shape[0]
    hid_dim = params['hidden_b'].shape[0]

    operands = [x.reshape(b_sz, h * w, c)]
    in_specs = [pl.BlockSpec((1, h * w, c), lambda i: (i, 0, 0))]

    def add_full(arr):  # whole-array VMEM block, fetched once (constant index)
        operands.append(arr)
        in_specs.append(pl.BlockSpec(arr.shape, lambda i, _n=arr.ndim: (0,) * _n))

    stage_hw = []
    hh, ww, cin = h, w, c
    flops = 0
    for p in params['conv_seqs']:
        cout = p['conv_w'].shape[0]
        stage_hw.append((hh, ww))
        wc, bc = _prep_conv(p['conv_w'], p['conv_b'])
        add_full(wc)
        add_full(bc)
        for rb in (p['rb0'], p['rb1']):
            w0, b0 = _prep_conv(rb['w0'], rb['b0'])
            w1, b1 = _prep_conv(rb['w1'], rb['b1'])
            add_full(w0)
            add_full(b0)
            add_full(w1)
            add_full(b1)
        m = hh * ww
        mo = ((hh + 1) // 2) * ((ww + 1) // 2)
        flops += 2 * m * 9 * cin * cout + 2 * mo * m * cout \
            + 4 * 2 * mo * 9 * cout * cout
        hh, ww, cin = (hh + 1) // 2, (ww + 1) // 2, cout

    p_sp = hh * ww
    assert params['hidden_w'].shape[1] == p_sp * cin
    # torch flattens NCHW: feature index = c*P + p  ->  reorder rows to (p, c).
    wh3 = (params['hidden_w'].T.reshape(cin, p_sp, hid_dim)
           .transpose(1, 0, 2).astype(jnp.bfloat16))
    bh = params['hidden_b'].reshape(1, hid_dim).astype(jnp.float32)
    w_head = jnp.concatenate([params['logits_w'].T, params['value_w'].T],
                             axis=1).astype(jnp.bfloat16)
    b_head = jnp.concatenate([params['logits_b'], params['value_b']]
                             ).reshape(1, num_actions + 1).astype(jnp.float32)
    add_full(wh3)
    add_full(bh)
    add_full(w_head)
    add_full(b_head)
    flops += 2 * p_sp * cin * hid_dim + 2 * hid_dim * (num_actions + 1)
    flops *= b_sz

    out_shape = (jax.ShapeDtypeStruct((b_sz, 1, num_actions), jnp.float32),
                 jax.ShapeDtypeStruct((b_sz, 1, num_actions), jnp.float32),
                 jax.ShapeDtypeStruct((b_sz, 1, 1), jnp.float32))
    out_specs = (pl.BlockSpec((1, 1, num_actions), lambda i: (i, 0, 0)),
                 pl.BlockSpec((1, 1, num_actions), lambda i: (i, 0, 0)),
                 pl.BlockSpec((1, 1, 1), lambda i: (i, 0, 0)))

    bytes_accessed = int(
        sum(math.prod(op.shape) * op.dtype.itemsize for op in operands)
        + sum(math.prod(s.shape) * 4 for s in out_shape))

    logits3, logp3, value3 = pl.pallas_call(
        _make_forward_kernel(tuple(stage_hw), num_actions),
        out_shape=out_shape,
        grid=(b_sz,),
        in_specs=in_specs,
        out_specs=out_specs,
        compiler_params=pltpu.CompilerParams(
            dimension_semantics=("parallel",)),   # shard batch across v7x's 2 TCs
        cost_estimate=pl.CostEstimate(
            flops=int(flops),
            transcendentals=int(2 * b_sz * num_actions),
            bytes_accessed=bytes_accessed),
    )(*operands)

    logits = logits3.reshape(b_sz, num_actions)
    log_probs = logp3.reshape(b_sz, num_actions)
    value = value3.reshape(b_sz)
    # TODO(synk): torch.distributions.Categorical has no Pallas equivalent; we
    # return logits (its sufficient statistic) plus log-probs instead.
    return logits, log_probs, value, memory      # use_memory=False -> passthrough


# ------------------------------ parameter init --------------------------------

def init_params(key, input_shape_hwc, num_outputs):
    h, w, c = input_shape_hwc
    keys = iter(jax.random.split(key, 64))

    def conv_p(cin, cout):
        kw_, kb_ = next(keys), next(keys)
        return (0.1 * jax.random.normal(kw_, (cout, cin, 3, 3), jnp.float32),
                0.01 * jax.random.normal(kb_, (cout,), jnp.float32))

    params = {'conv_seqs': []}
    cin, hh, ww = c, h, w
    for cout in [16, 32, 32]:
        cw, cb = conv_p(cin, cout)
        w00, b00 = conv_p(cout, cout)
        w01, b01 = conv_p(cout, cout)
        w10, b10 = conv_p(cout, cout)
        w11, b11 = conv_p(cout, cout)
        params['conv_seqs'].append({
            'conv_w': cw, 'conv_b': cb,
            'rb0': {'w0': w00, 'b0': b00, 'w1': w01, 'b1': b01},
            'rb1': {'w0': w10, 'b0': b10, 'w1': w11, 'b1': b11},
        })
        cin, hh, ww = cout, (hh + 1) // 2, (ww + 1) // 2

    flat_features = cin * hh * ww             # what LazyLinear would infer
    params['hidden_w'] = 0.05 * jax.random.normal(
        next(keys), (256, flat_features), jnp.float32)   # torch layout (out, in)
    params['hidden_b'] = jnp.zeros((256,), jnp.float32)
    params['logits_w'] = 0.01 * jax.random.normal(
        next(keys), (num_outputs, 256), jnp.float32)
    params['logits_b'] = jnp.zeros((num_outputs,), jnp.float32)
    params['value_w'] = 0.05 * jax.random.normal(next(keys), (1, 256), jnp.float32)
    params['value_b'] = jnp.zeros((1,), jnp.float32)
    return params


# ----------------------------------- main --------------------------------------

if __name__ == "__main__":
    B, H, W, C = 2, 16, 16, 4
    NUM_ACTIONS = 7

    key = jax.random.PRNGKey(0)
    k_obs, k_params = jax.random.split(key)
    obs = jax.random.uniform(k_obs, (B, H, W, C), jnp.float32)
    params = init_params(k_params, (H, W, C), NUM_ACTIONS)
    memory = jnp.zeros((B, C * H * W), jnp.float32)   # memory_size = c*h*w

    detect_roll_convention()     # one tiny probe kernel, run once outside jit

    fwd = jax.jit(impala_cnn_forward)
    logits, log_probs, value, mem_out = fwd(obs, memory, params)
    jax.block_until_ready((logits, log_probs, value, mem_out))

    assert logits.shape == (B, NUM_ACTIONS)
    assert log_probs.shape == (B, NUM_ACTIONS)
    assert value.shape == (B,)
    assert mem_out.shape == memory.shape
    print("KERNEL_OK")
</pallas_src>

<mosaic_0001>
module attributes {stable_mosaic.version = 11 : i64} {
  func.func @probe(%arg0: memref<8x128xf32, #tpu.memory_space<vmem>>, %arg1: memref<8x128xf32, #tpu.memory_space<vmem>>) attributes {dimension_semantics = [], scalar_prefetch = 0 : i64, scratch_operands = 0 : i64, tpu.core_type = #tpu.core_type<tc>} {
    %c0 = arith.constant 0 : index
    %c0_0 = arith.constant 0 : index
    %0 = vector.load %arg0[%c0, %c0_0] : memref<8x128xf32, #tpu.memory_space<vmem>>, vector<8x128xf32>
    %c1_i32 = arith.constant 1 : i32
    %1 = tpu.dynamic_rotate %0 by %c1_i32 dim 0 : vector<8x128xf32>, i32 -> vector<8x128xf32>
    %c0_1 = arith.constant 0 : index
    %c0_2 = arith.constant 0 : index
    %2 = vector.load %arg1[%c0_1, %c0_2] : memref<8x128xf32, #tpu.memory_space<vmem>>, vector<8x128xf32>
    tpu.vector_store %arg1[%c0_1, %c0_2], %1 {strides = array<i32>} : memref<8x128xf32, #tpu.memory_space<vmem>>, vector<8x128xf32>,
    return
  }
}

</mosaic_0001>

<llo_original>
// kernel: tpu_custom_call.1
$region0: #{tpu_custom_call.1}
  #allocation0 [shape = 'u32[]', space=smem, size = 0x4, offset = 0x4, fixed_abs, tag = 'smem constant byte address 0x4 - core index']
  #allocation1 [shape = 'u32[144,128]{1,0:T(1,128)}', space=vmem, size = 0x12000, scoped, tag = 'internal scratch']
  %s0 = inlined_call_operand.hbm [shape: f32[8,128], index: 0, kind: input, shape index: {}]
  %s1 = inlined_call_operand.hbm [shape: f32[8,128], index: 1, kind: output, shape index: {}]
  %s2 = sld [smem:[#allocation0]]
  $region18: #{tpu_custom_call.1} parent=0
    _
  %s4 = ssub.s32 1, %s2
  %s5 = scalar_select 0, %s4, %s2
  $region1: #{tpu_custom_call.1} parent=0
    #allocation2 [shape = 'u8[4096]{0}', space=vmem, size = 0x1000, scoped, tag = 'input window, operand 0, single buffered']
    #allocation3 [shape = 's32[1]{0}', space=sflag, size = 0x4, scoped, tag = 'scoped memory for tpu_custom_call.1']
    #allocation4 [shape = 's32[1]{0}', space=sflag, size = 0x4, scoped, tag = 'scoped memory for tpu_custom_call.1']
    #allocation5 [shape = 'u8[4096]{0}', space=vmem, size = 0x1000, scoped, tag = 'output window, operand 0, single buffered']
    %6 = vsyncpa [#allocation3], 0
    %7 = vsyncpa [#allocation4], 0
    // Predicated region
    $region2: #{tpu_custom_call.1} parent=1 // pred_check
      _
    $region3: #{tpu_custom_call.1} parent=1 // pred_check_branch
      %9 = sbr.rel (0) target = $region5
    $region4: #{tpu_custom_call.1} parent=1 // pred_region
      %s11 = ssub.s32 128, 128
      %12 = vsyncadd [#allocation3], %s11
      %s14 = sshll.u32 [#allocation2], 4
      %s15 = int_to_ptr.vmem [resolvable:$true] %s14
      %17 = dma.hbm_to_vmem [thread:$0]  %s0, 128, %s15, [#allocation3]
    $region5: #{tpu_custom_call.1} parent=1 // pred_fallthru
      _
    // Predicated region
    $region6: #{tpu_custom_call.1} parent=1 // pred_check
      _
    $region7: #{tpu_custom_call.1} parent=1 // pred_check_branch
      %19 = sbr.rel (0) target = $region9
    $region8: #{tpu_custom_call.1} parent=1 // pred_region
      %20 = dma.done [#allocation3], 128
    $region9: #{tpu_custom_call.1} parent=1 // pred_fallthru
      _
    %v21 = vld [vmem:[#allocation2] sm:$0xff]
    %v22 = vrot.slane %v21, 7
    %23 = vst [vmem:[#allocation5] sm:$0xff] %v22
    // Predicated region
    $region10: #{tpu_custom_call.1} parent=1 // pred_check
      _
    $region11: #{tpu_custom_call.1} parent=1 // pred_check_branch
      %25 = sbr.rel (0) target = $region13
    $region12: #{tpu_custom_call.1} parent=1 // pred_region
      %s27 = ssub.s32 128, 128
      %28 = vsyncadd [#allocation4], %s27
      %s30 = sshll.u32 [#allocation5], 4
      %s31 = int_to_ptr.vmem [resolvable:$true] %s30
      %33 = dma.vmem_to_hbm [thread:$0]  %s31, 128, %s1, [#allocation4]
    $region13: #{tpu_custom_call.1} parent=1 // pred_fallthru
      _
    // Predicated region
    $region14: #{tpu_custom_call.1} parent=1 // pred_check
      _
    $region15: #{tpu_custom_call.1} parent=1 // pred_check_branch
      %35 = sbr.rel (0) target = $region17
    $region16: #{tpu_custom_call.1} parent=1 // pred_region
      %36 = dma.done [#allocation4], 128
    $region17: #{tpu_custom_call.1} parent=1 // pred_fallthru
      _
    %37 = vsyncpa [#allocation3], 1
    %38 = vsyncpa [#allocation4], 1

</llo_original>
